<compile_context>
chip_gen: v7x
topology: tpu7x:2x2x1
jax: 0.10.0
libtpu: 0.0.40
codegen_flags: <defaults>
</compile_context>

<pallas_src>
import math
from functools import partial

import jax
import jax.numpy as jnp
from jax import lax
from jax.experimental import pallas as pl
from jax.experimental.pallas import tpu as pltpu


def _round_up(x, m):
    return (x + m - 1) // m * m


def _gelu(x):
    # ComplexGELU = GELU applied independently to the real / imaginary planes.
    # TODO(synk): PyTorch nn.GELU defaults to the exact erf form; the tanh
    # approximation is used here (erf is not guaranteed to lower in Mosaic).
    # The reference below uses the same form, so the self-check is apples-to-apples.
    return jax.nn.gelu(x, approximate=True)


# --------------------------------------------------------------------------- #
# Kernel
# --------------------------------------------------------------------------- #
def _diffusion_embedding_kernel(t_ref, tbl_ref, w2_ref, b2_ref, y_ref, *, max_step):
    B = t_ref.shape[0]
    SP = tbl_ref.shape[0]

    # ---- embedding lookup / lerp as a selection matmul (handles int & float t).
    # Valid input domain is t in [0, max_step-1]; indices are clamped defensively.
    # TODO(synk): for very large max_step (SP >~ 1024) switch to a scalar-prefetch
    # gather instead of the selection matmul; at SP=128 the matmul is one MXU push.
    t = t_ref[...]                                  # (B, 1) float32
    low = jnp.floor(t)
    frac = t - low                                  # 0 for integer timesteps
    low_i = jnp.clip(low.astype(jnp.int32), 0, max_step - 1)
    high_i = jnp.clip(jnp.ceil(t).astype(jnp.int32), 0, max_step - 1)
    col = lax.broadcasted_iota(jnp.int32, (B, SP), 1)
    sel = (jnp.where(col == low_i, 1.0 - frac, 0.0)
           + jnp.where(col == high_i, frac, 0.0))
    sel = sel.astype(tbl_ref.dtype)                 # bf16 for MXU-native matmul

    # ---- fused (embedding gather/lerp -> ComplexLinear #1 + bias) in ONE matmul:
    # table1 = [cos|sin] @ W1_blk + b1, and rows of sel sum to exactly 1.
    h = jnp.dot(sel, tbl_ref[...], preferred_element_type=jnp.float32)

    # ---- ComplexGELU (elementwise on the packed [re | im] planes)
    g = _gelu(h)

    # ---- ComplexLinear #2, lane-dense packed output [y_re | y_im | 0-pad]
    y = jnp.dot(g.astype(w2_ref.dtype), w2_ref[...],
                preferred_element_type=jnp.float32) + b2_ref[...]
    y_ref[...] = y


# --------------------------------------------------------------------------- #
# Parameter / table construction & packing (done once at init time)
# --------------------------------------------------------------------------- #
def build_embedding(max_step, embed_dim):
    """table = exp(1j * steps * exp(-log(max_step) * dims / embed_dim)) -> (re, im)."""
    steps = jnp.arange(max_step, dtype=jnp.float32)[:, None]
    dims = jnp.arange(embed_dim, dtype=jnp.float32)[None, :]
    phase = steps * jnp.exp(-math.log(max_step) * dims / embed_dim)
    return jnp.cos(phase), jnp.sin(phase)  # real, imag


def init_params(key, embed_dim, flat=2):
    mid_dim = int(embed_dim * flat)
    ks = jax.random.split(key, 8)

    def lin(kw, kb, out_f, in_f):
        bound = 1.0 / math.sqrt(in_f)
        w = jax.random.uniform(kw, (out_f, in_f), jnp.float32, -bound, bound)
        b = jax.random.uniform(kb, (out_f,), jnp.float32, -bound, bound)
        return w, b

    w1_re, b1_re = lin(ks[0], ks[1], mid_dim, embed_dim)
    w1_im, b1_im = lin(ks[2], ks[3], mid_dim, embed_dim)
    w2_re, b2_re = lin(ks[4], ks[5], embed_dim, mid_dim)
    w2_im, b2_im = lin(ks[6], ks[7], embed_dim, mid_dim)
    return dict(w1_re=w1_re, w1_im=w1_im, b1_re=b1_re, b1_im=b1_im,
                w2_re=w2_re, w2_im=w2_im, b2_re=b2_re, b2_im=b2_im)


def pack_operands(emb_re, emb_im, params, weight_dtype=jnp.bfloat16):
    """Fuse table through linear #1, block-pack complex weights, pad lane-dense."""
    max_step, D = emb_re.shape
    mid = params["w1_re"].shape[0]
    SP = _round_up(max_step, 128)      # lane dim of the selection matrix
    D2P = _round_up(2 * D, 128)        # packed embed dim (lane-dense)
    MP = _round_up(2 * mid, 128)       # packed hidden dim (lane-dense)

    def blk(w_re, w_im):
        # x_packed @ W_blk reproduces:
        #   h_re = x_re @ Wre^T - x_im @ Wim^T
        #   h_im = x_re @ Wim^T + x_im @ Wre^T
        top = jnp.concatenate([w_re.T, w_im.T], axis=1)
        bot = jnp.concatenate([-w_im.T, w_re.T], axis=1)
        return jnp.concatenate([top, bot], axis=0)            # (2*in, 2*out)

    def pack_bias(b_re, b_im):
        return jnp.concatenate([b_re, b_im])[None, :]          # (1, 2*out)

    # --- fuse embedding table through ComplexLinear #1 (bias folded: sel rows sum to 1)
    emb2 = jnp.concatenate([emb_re, emb_im], axis=1)            # (max_step, 2D)
    w1_blk = blk(params["w1_re"], params["w1_im"])              # (2D, 2*mid)
    b1_pk = pack_bias(params["b1_re"], params["b1_im"])         # (1, 2*mid)
    table = emb2 @ w1_blk + b1_pk                               # (max_step, 2*mid) f32
    table1 = jnp.zeros((SP, MP), jnp.float32).at[:max_step, :2 * mid].set(table)

    w2_blk = blk(params["w2_re"], params["w2_im"])              # (2*mid, 2D)
    w2 = jnp.zeros((MP, D2P), jnp.float32).at[:2 * mid, :2 * D].set(w2_blk)
    b2 = jnp.zeros((1, D2P), jnp.float32).at[0, :2 * D].set(
        jnp.concatenate([params["b2_re"], params["b2_im"]]))

    return dict(table1=table1.astype(weight_dtype),
                w2=w2.astype(weight_dtype),
                b2=b2,                      # bias stays f32 (added to f32 accumulator)
                embed_dim=int(D), max_step=int(max_step))


# --------------------------------------------------------------------------- #
# Wrapper
# --------------------------------------------------------------------------- #
_GRIDLESS_MAX_B = 256    # up to this batch: single gridless VMEM-resident call
_BATCH_BLOCK = 256       # above it: lane-dense B-grid blocks of this many rows


@partial(jax.jit, static_argnames=("embed_dim", "max_step"))
def _call_kernel(t_f32, table1, w2, b2, *, embed_dim, max_step):
    B = t_f32.shape[0]
    SP, MP = table1.shape
    D2P = w2.shape[1]
    kernel = partial(_diffusion_embedding_kernel, max_step=max_step)

    # Tiny kernel inside potentially large jitted graphs: tell XLA it's cheap.
    cost = pl.CostEstimate(
        flops=2 * B * (SP * MP + MP * D2P),
        transcendentals=B * MP,
        bytes_accessed=(t_f32.size * 4
                        + table1.size * table1.dtype.itemsize
                        + w2.size * w2.dtype.itemsize
                        + b2.size * 4 + B * D2P * 4))

    if B <= _GRIDLESS_MAX_B:
        # Gridless, fully VMEM-resident (< 100 KiB total) -> no per-step overhead.
        vmem = pl.BlockSpec(memory_space=pltpu.MemorySpace.VMEM)
        y = pl.pallas_call(
            kernel,
            out_shape=jax.ShapeDtypeStruct((B, D2P), jnp.float32),
            in_specs=[vmem] * 4,
            out_specs=vmem,
            cost_estimate=cost,
        )(t_f32, table1, w2, b2)
    else:
        # Large batch: grid over B so VMEM stays bounded on every generation
        # (v5e 16 MiB / v7x 64 MiB) and v7x's two TensorCores split the batch.
        BB = _BATCH_BLOCK
        Bp = _round_up(B, BB)
        t_pad = jnp.pad(t_f32, ((0, Bp - B), (0, 0)))   # pad with t=0 (valid row)
        y = pl.pallas_call(
            kernel,
            out_shape=jax.ShapeDtypeStruct((Bp, D2P), jnp.float32),
            grid=(Bp // BB,),
            in_specs=[pl.BlockSpec((BB, 1), lambda i: (i, 0)),
                      pl.BlockSpec((SP, MP), lambda i: (0, 0)),     # weights resident
                      pl.BlockSpec((MP, D2P), lambda i: (0, 0)),
                      pl.BlockSpec((1, D2P), lambda i: (0, 0))],
            out_specs=pl.BlockSpec((BB, D2P), lambda i: (i, 0)),
            compiler_params=pltpu.CompilerParams(
                dimension_semantics=("parallel",)),
            cost_estimate=cost,
        )(t_pad, table1, w2, b2)
        y = y[:B]

    # Lane-dense packed store inside the kernel; the re/im split is a wrapper slice.
    return y[:, :embed_dim], y[:, embed_dim:2 * embed_dim]


def diffusion_embedding(t, packed):
    # Integer timesteps: floor == ceil == t, so the in-kernel lerp reduces to an
    # exact gather (frac = 0).  max_step is small, so int -> f32 is exact.
    t_f32 = t.astype(jnp.float32).reshape(-1, 1)
    return _call_kernel(t_f32, packed["table1"], packed["w2"], packed["b2"],
                        embed_dim=packed["embed_dim"], max_step=packed["max_step"])


# --------------------------------------------------------------------------- #
# Pure-JAX complex reference
# --------------------------------------------------------------------------- #
def diffusion_embedding_ref(t, emb_re, emb_im, params):
    if jnp.issubdtype(t.dtype, jnp.integer):
        x_re, x_im = emb_re[t], emb_im[t]
    else:
        low_idx = jnp.floor(t).astype(jnp.int32)
        high_idx = jnp.ceil(t).astype(jnp.int32)
        frac = (t - low_idx.astype(t.dtype))[:, None]
        x_re = emb_re[low_idx] + (emb_re[high_idx] - emb_re[low_idx]) * frac
        x_im = emb_im[low_idx] + (emb_im[high_idx] - emb_im[low_idx]) * frac
    x = x_re + 1j * x_im
    w1 = params["w1_re"] + 1j * params["w1_im"]
    b1 = params["b1_re"] + 1j * params["b1_im"]
    w2 = params["w2_re"] + 1j * params["w2_im"]
    b2 = params["b2_re"] + 1j * params["b2_im"]
    h = x @ w1.T + b1
    g = _gelu(h.real) + 1j * _gelu(h.imag)
    y = g @ w2.T + b2
    return y


if __name__ == "__main__":
    max_step = 50
    embed_dim = 32
    flat = 2
    batch = 8

    key = jax.random.PRNGKey(0)
    k_param, k_t, k_tf, k_tb = jax.random.split(key, 4)

    emb_re, emb_im = build_embedding(max_step, embed_dim)
    params = init_params(k_param, embed_dim, flat)
    packed = pack_operands(emb_re, emb_im, params)

    # bf16 static operands vs f32 complex reference -> widened (but meaningful) tolerance.
    ATOL = RTOL = 2e-2

    # integer-timestep path (embedding gather), small batch -> gridless path
    t_int = jax.random.randint(k_t, (batch,), 0, max_step, dtype=jnp.int32)
    y_re, y_im = diffusion_embedding(t_int, packed)
    jax.block_until_ready((y_re, y_im))
    y_ref = diffusion_embedding_ref(t_int, emb_re, emb_im, params)
    assert jnp.allclose(y_re, y_ref.real, atol=ATOL, rtol=RTOL)
    assert jnp.allclose(y_im, y_ref.imag, atol=ATOL, rtol=RTOL)

    # float-timestep path (lerp between neighbouring embedding rows)
    t_flt = jax.random.uniform(k_tf, (batch,), jnp.float32, 0.0, max_step - 1.0)
    y_re_f, y_im_f = diffusion_embedding(t_flt, packed)
    jax.block_until_ready((y_re_f, y_im_f))
    y_ref_f = diffusion_embedding_ref(t_flt, emb_re, emb_im, params)
    assert jnp.allclose(y_re_f, y_ref_f.real, atol=ATOL, rtol=RTOL)
    assert jnp.allclose(y_im_f, y_ref_f.imag, atol=ATOL, rtol=RTOL)

    # large-batch path (B-grid, parallel dimension semantics, padded to 256-row blocks)
    t_big = jax.random.randint(k_tb, (600,), 0, max_step, dtype=jnp.int32)
    y_re_b, y_im_b = diffusion_embedding(t_big, packed)
    jax.block_until_ready((y_re_b, y_im_b))
    y_ref_b = diffusion_embedding_ref(t_big, emb_re, emb_im, params)
    assert jnp.allclose(y_re_b, y_ref_b.real, atol=ATOL, rtol=RTOL)
    assert jnp.allclose(y_im_b, y_ref_b.imag, atol=ATOL, rtol=RTOL)

    print("KERNEL_OK")
</pallas_src>

<mosaic_0001>
module attributes {stable_mosaic.version = 11 : i64} {
  func.func @_diffusion_embedding_kernel(%arg0: memref<8x1xf32, #tpu.memory_space<vmem>>, %arg1: memref<128x128xbf16, #tpu.memory_space<vmem>>, %arg2: memref<128x128xbf16, #tpu.memory_space<vmem>>, %arg3: memref<1x128xf32, #tpu.memory_space<vmem>>, %arg4: memref<8x128xf32, #tpu.memory_space<vmem>>) attributes {dimension_semantics = [], scalar_prefetch = 0 : i64, scratch_operands = 0 : i64, tpu.core_type = #tpu.core_type<tc>} {
    %c0 = arith.constant 0 : index
    %c0_0 = arith.constant 0 : index
    %0 = vector.load %arg0[%c0, %c0_0] : memref<8x1xf32, #tpu.memory_space<vmem>>, vector<8x1xf32>
    %1 = math.floor %0 : vector<8x1xf32>
    %2 = arith.subf %0, %1 : vector<8x1xf32>
    %3 = arith.fptosi %1 : vector<8x1xf32> to vector<8x1xi32>
    %c0_i32 = arith.constant 0 : i32
    %c49_i32 = arith.constant 49 : i32
    %4 = vector.broadcast %c0_i32 : i32 to vector<8x1xi32>
    %5 = arith.maxsi %4, %3 : vector<8x1xi32>
    %6 = vector.broadcast %c49_i32 : i32 to vector<8x1xi32>
    %7 = arith.minsi %6, %5 : vector<8x1xi32>
    %8 = math.ceil %0 : vector<8x1xf32>
    %9 = arith.fptosi %8 : vector<8x1xf32> to vector<8x1xi32>
    %c0_i32_1 = arith.constant 0 : i32
    %c49_i32_2 = arith.constant 49 : i32
    %10 = vector.broadcast %c0_i32_1 : i32 to vector<8x1xi32>
    %11 = arith.maxsi %10, %9 : vector<8x1xi32>
    %12 = vector.broadcast %c49_i32_2 : i32 to vector<8x1xi32>
    %13 = arith.minsi %12, %11 : vector<8x1xi32>
    %14 = tpu.iota {dimensions = array<i32: 1>} : vector<8x128xi32>
    %15 = vector.broadcast %7 : vector<8x1xi32> to vector<8x128xi32>
    %16 = arith.cmpi eq, %14, %15 : vector<8x128xi32>
    %cst = arith.constant 1.000000e+00 : f32
    %17 = vector.broadcast %cst : f32 to vector<8x1xf32>
    %18 = arith.subf %17, %2 : vector<8x1xf32>
    %cst_3 = arith.constant 0.000000e+00 : f32
    %19 = vector.shape_cast %18 : vector<8x1xf32> to vector<8x1xf32>
    %20 = vector.broadcast %19 : vector<8x1xf32> to vector<8x128xf32>
    %21 = vector.broadcast %cst_3 : f32 to vector<8x128xf32>
    %22 = arith.select %16, %20, %21 : vector<8x128xi1>, vector<8x128xf32>
    %23 = vector.broadcast %13 : vector<8x1xi32> to vector<8x128xi32>
    %24 = arith.cmpi eq, %14, %23 : vector<8x128xi32>
    %cst_4 = arith.constant 0.000000e+00 : f32
    %25 = vector.shape_cast %2 : vector<8x1xf32> to vector<8x1xf32>
    %26 = vector.broadcast %25 : vector<8x1xf32> to vector<8x128xf32>
    %27 = vector.broadcast %cst_4 : f32 to vector<8x128xf32>
    %28 = arith.select %24, %26, %27 : vector<8x128xi1>, vector<8x128xf32>
    %29 = arith.addf %22, %28 : vector<8x128xf32>
    %30 = arith.truncf %29 : vector<8x128xf32> to vector<8x128xbf16>
    %c0_5 = arith.constant 0 : index
    %c0_6 = arith.constant 0 : index
    %31 = vector.load %arg1[%c0_5, %c0_6] : memref<128x128xbf16, #tpu.memory_space<vmem>>, vector<128x128xbf16>
    %cst_7 = arith.constant dense<0.000000e+00> : vector<8x128xf32>
    %32 = tpu.matmul %30, %31, %cst_7 {dimension_numbers = #tpu.dot_dimension_numbers<[1], [0], [0], [1], [0, 0, 1, 1], [], []>} : vector<8x128xbf16>, vector<128x128xbf16>, vector<8x128xf32> -> vector<8x128xf32>
    %33 = arith.mulf %32, %32 : vector<8x128xf32>
    %34 = arith.mulf %32, %33 : vector<8x128xf32>
    %cst_8 = arith.constant 4.471500e-02 : f32
    %35 = vector.broadcast %cst_8 : f32 to vector<8x128xf32>
    %36 = arith.mulf %35, %34 : vector<8x128xf32>
    %37 = arith.addf %32, %36 : vector<8x128xf32>
    %cst_9 = arith.constant 0.797884583 : f32
    %38 = vector.broadcast %cst_9 : f32 to vector<8x128xf32>
    %39 = arith.mulf %38, %37 : vector<8x128xf32>
    %40 = math.tanh %39 : vector<8x128xf32>
    %cst_10 = arith.constant 1.000000e+00 : f32
    %41 = vector.broadcast %cst_10 : f32 to vector<8x128xf32>
    %42 = arith.addf %41, %40 : vector<8x128xf32>
    %cst_11 = arith.constant 5.000000e-01 : f32
    %43 = vector.broadcast %cst_11 : f32 to vector<8x128xf32>
    %44 = arith.mulf %43, %42 : vector<8x128xf32>
    %45 = arith.mulf %32, %44 : vector<8x128xf32>
    %46 = arith.truncf %45 : vector<8x128xf32> to vector<8x128xbf16>
    %c0_12 = arith.constant 0 : index
    %c0_13 = arith.constant 0 : index
    %47 = vector.load %arg2[%c0_12, %c0_13] : memref<128x128xbf16, #tpu.memory_space<vmem>>, vector<128x128xbf16>
    %cst_14 = arith.constant dense<0.000000e+00> : vector<8x128xf32>
    %48 = tpu.matmul %46, %47, %cst_14 {dimension_numbers = #tpu.dot_dimension_numbers<[1], [0], [0], [1], [0, 0, 1, 1], [], []>} : vector<8x128xbf16>, vector<128x128xbf16>, vector<8x128xf32> -> vector<8x128xf32>
    %c0_15 = arith.constant 0 : index
    %c0_16 = arith.constant 0 : index
    %49 = vector.load %arg3[%c0_15, %c0_16] : memref<1x128xf32, #tpu.memory_space<vmem>>, vector<1x128xf32>
    %50 = vector.broadcast %49 : vector<1x128xf32> to vector<8x128xf32>
    %51 = arith.addf %48, %50 : vector<8x128xf32>
    %c0_17 = arith.constant 0 : index
    %c0_18 = arith.constant 0 : index
    %52 = vector.load %arg4[%c0_17, %c0_18] : memref<8x128xf32, #tpu.memory_space<vmem>>, vector<8x128xf32>
    tpu.vector_store %arg4[%c0_17, %c0_18], %51 {strides = array<i32>} : memref<8x128xf32, #tpu.memory_space<vmem>>, vector<8x128xf32>,
    return
  }
}

</mosaic_0001>

<llo_original>
// kernel: _call_kernel.1
$region0: #{_call_kernel.1}
  #allocation0 [shape = 'u32[]', space=smem, size = 0x4, offset = 0x4, fixed_abs, tag = 'smem constant byte address 0x4 - core index']
  #allocation1 [shape = 'u32[144,128]{1,0:T(1,128)}', space=vmem, size = 0x12000, scoped, tag = 'internal scratch']
  %s0 = inlined_call_operand.vmem [shape: f32[8,1], index: 0, kind: input, shape index: {}]
  %s1 = inlined_call_operand.hbm [shape: bf16[128,128], index: 1, kind: input, shape index: {}]
  %s2 = inlined_call_operand.hbm [shape: bf16[128,128], index: 2, kind: input, shape index: {}]
  %s3 = inlined_call_operand.vmem [shape: f32[1,128], index: 3, kind: input, shape index: {}]
  %s4 = inlined_call_operand.vmem [shape: f32[8,128], index: 4, kind: output, shape index: {}]
  %s5 = sld [smem:[#allocation0]]
  $region34: #{_call_kernel.1} parent=0
    _
  %s7 = ssub.s32 1, %s5
  %s8 = scalar_select 0, %s7, %s5
  $region1: #{_call_kernel.1} parent=0
    #allocation2 [shape = 'u8[32768]{0}', space=vmem, size = 0x8000, scoped, tag = 'input window, operand 1, single buffered']
    #allocation3 [shape = 's32[1]{0}', space=sflag, size = 0x4, scoped, tag = 'scoped memory for _call_kernel.1']
    #allocation4 [shape = 'u8[32768]{0}', space=vmem, size = 0x8000, scoped, tag = 'input window, operand 2, single buffered']
    #allocation5 [shape = 's32[1]{0}', space=sflag, size = 0x4, scoped, tag = 'scoped memory for _call_kernel.1']
    %9 = vsyncpa [#allocation3], 0
    %10 = vsyncpa [#allocation5], 0
    // Predicated region
    $region2: #{_call_kernel.1} parent=1 // pred_check
      _
    $region3: #{_call_kernel.1} parent=1 // pred_check_branch
      %12 = sbr.rel (0) target = $region5
    $region4: #{_call_kernel.1} parent=1 // pred_region
      _
    $region5: #{_call_kernel.1} parent=1 // pred_fallthru
      _
    // Predicated region
    $region6: #{_call_kernel.1} parent=1 // pred_check
      _
    $region7: #{_call_kernel.1} parent=1 // pred_check_branch
      %14 = sbr.rel (0) target = $region9
    $region8: #{_call_kernel.1} parent=1 // pred_region
      %s16 = ssub.s32 1024, 1024
      %17 = vsyncadd [#allocation3], %s16
      %s18 = sshll.u32 [#allocation2], 4
      %s19 = int_to_ptr.vmem [resolvable:$true] %s18
      %24 = dma.hbm_to_vmem [thread:$0]  %s1, 1024, %s19, [#allocation3], 64, 64, 4
    $region9: #{_call_kernel.1} parent=1 // pred_fallthru
      _
    // Predicated region
    $region10: #{_call_kernel.1} parent=1 // pred_check
      _
    $region11: #{_call_kernel.1} parent=1 // pred_check_branch
      %26 = sbr.rel (0) target = $region13
    $region12: #{_call_kernel.1} parent=1 // pred_region
      %s28 = ssub.s32 1024, 1024
      %29 = vsyncadd [#allocation5], %s28
      %s30 = sshll.u32 [#allocation4], 4
      %s31 = int_to_ptr.vmem [resolvable:$true] %s30
      %36 = dma.hbm_to_vmem [thread:$0]  %s2, 1024, %s31, [#allocation5], 64, 64, 4
    $region13: #{_call_kernel.1} parent=1 // pred_fallthru
      _
    // Predicated region
    $region14: #{_call_kernel.1} parent=1 // pred_check
      _
    $region15: #{_call_kernel.1} parent=1 // pred_check_branch
      %38 = sbr.rel (0) target = $region17
    $region16: #{_call_kernel.1} parent=1 // pred_region
      _
    $region17: #{_call_kernel.1} parent=1 // pred_fallthru
      _
    // Predicated region
    $region18: #{_call_kernel.1} parent=1 // pred_check
      _
    $region19: #{_call_kernel.1} parent=1 // pred_check_branch
      %40 = sbr.rel (0) target = $region21
    $region20: #{_call_kernel.1} parent=1 // pred_region
      %41 = dma.done [#allocation3], 1024
    $region21: #{_call_kernel.1} parent=1 // pred_fallthru
      _
    // Predicated region
    $region22: #{_call_kernel.1} parent=1 // pred_check
      _
    $region23: #{_call_kernel.1} parent=1 // pred_check_branch
      %43 = sbr.rel (0) target = $region25
    $region24: #{_call_kernel.1} parent=1 // pred_region
      %44 = dma.done [#allocation5], 1024
    $region25: #{_call_kernel.1} parent=1 // pred_fallthru
      _
    %v46 = vld [vmem:[%s0] sm:$0xff]
    %v47 = vfloor.f32 %v46
    %v48 = vsub.f32 %v46, %v47
    %v49 = vcvt.f32.s32.to.zero.pseudo %v47
    %vm50 = vcmp.gt.s32.totalorder %v49, 0
    %v51 = vsel %vm50, %v49, 0
    %vm52 = vcmp.lt.s32.totalorder %v51, 49
    %v53 = vsel %vm52, %v51, 49
    %v54 = vceil.f32 %v46
    %v55 = vcvt.f32.s32.to.zero.pseudo %v54
    %vm56 = vcmp.gt.s32.totalorder %v55, 0
    %v57 = vsel %vm56, %v55, 0
    %vm58 = vcmp.lt.s32.totalorder %v57, 49
    %v59 = vsel %vm58, %v57, 49
    %v60 = vlaneseq
    %v61 = vand.u32 %v60, 127
    %62 = vset.pattern.permute.xlu0 0
    %63 = vperm.xlu0 %62, %v53
    %v64 = vpop.permute.xlu0 %63
    %vm65 = vcmp.eq.s32.totalorder %v61, %v64
    %v66 = vsub.f32 1.0, %v48
    %68 = vset.pattern.permute.xlu0 0
    %69 = vperm.xlu0 %68, %v66
    %v70 = vpop.permute.xlu0 %69
    %v72 = vsel %vm65, %v70, 0.0
    %73 = vset.pattern.permute.xlu0 0
    %74 = vperm.xlu0 %73, %v59
    %v75 = vpop.permute.xlu0 %74
    %vm76 = vcmp.eq.s32.totalorder %v61, %v75
    %78 = vset.pattern.permute.xlu0 0
    %79 = vperm.xlu0 %78, %v48
    %v80 = vpop.permute.xlu0 %79
    %v82 = vsel %vm76, %v80, 0.0
    %v83 = vadd.f32 %v72, %v82
    %v84 = vpack.c.bf16 %v83, %v83
    %v85 = vld [vmem:[#allocation2] sm:$0xf]
    %v86 = vld [vmem:[#allocation2 + $0x4] sm:$0xf]
    %v87 = vld [vmem:[#allocation2 + $0x8] sm:$0xf]
    %v88 = vld [vmem:[#allocation2 + $0xc] sm:$0xf]
    %v89 = vld [vmem:[#allocation2 + $0x10] sm:$0xf]
    %v90 = vld [vmem:[#allocation2 + $0x14] sm:$0xf]
    %v91 = vld [vmem:[#allocation2 + $0x18] sm:$0xf]
    %v92 = vld [vmem:[#allocation2 + $0x1c] sm:$0xf]
    %v93 = vld [vmem:[#allocation2 + $0x20] sm:$0xf]
    %v94 = vld [vmem:[#allocation2 + $0x24] sm:$0xf]
    %v95 = vld [vmem:[#allocation2 + $0x28] sm:$0xf]
    %v96 = vld [vmem:[#allocation2 + $0x2c] sm:$0xf]
    %v97 = vld [vmem:[#allocation2 + $0x30] sm:$0xf]
    %v98 = vld [vmem:[#allocation2 + $0x34] sm:$0xf]
    %v99 = vld [vmem:[#allocation2 + $0x38] sm:$0xf]
    %v100 = vld [vmem:[#allocation2 + $0x3c] sm:$0xf]
    %v117 = vunpack.c.l.b16 %v85
    %v118 = vunpack.c.l.b16 %v86
    %v119 = vunpack.c.l.b16 %v87
    %v120 = vunpack.c.l.b16 %v88
    %v121 = vunpack.c.l.b16 %v89
    %v122 = vunpack.c.l.b16 %v90
    %v123 = vunpack.c.l.b16 %v91
    %v124 = vunpack.c.l.b16 %v92
    %v125 = vunpack.c.l.b16 %v93
    %v126 = vunpack.c.l.b16 %v94
    %v127 = vunpack.c.l.b16 %v95
    %v128 = vunpack.c.l.b16 %v96
    %v129 = vunpack.c.l.b16 %v97
    %v130 = vunpack.c.l.b16 %v98
    %v131 = vunpack.c.l.b16 %v99
    %v132 = vunpack.c.l.b16 %v100
    %v133 = vpack.c.b16 %v118, %v117
    %v134 = vpack.c.b16 %v120, %v119
    %v135 = vpack.c.b16 %v122, %v121
    %v136 = vpack.c.b16 %v124, %v123
    %v137 = vpack.c.b16 %v126, %v125
    %v138 = vpack.c.b16 %v128, %v127
    %v139 = vpack.c.b16 %v130, %v129
    %v140 = vpack.c.b16 %v132, %v131
    %149 = vmatprep.subr.bf16.mxu0 0
    %150 = vmatpush1.bf16.msra.mxu0 %v133
    %151 = vmatprep.subr.bf16.mxu0 0
    %152 = vmatpush1.bf16.msra.mxu0 %v134
    %153 = vmatprep.subr.bf16.mxu0 0
    %154 = vmatpush1.bf16.msra.mxu0 %v135
    %155 = vmatprep.subr.bf16.mxu0 0
    %156 = vmatpush1.bf16.msra.mxu0 %v136
    %157 = vmatprep.subr.bf16.mxu0 0
    %158 = vmatpush1.bf16.msra.mxu0 %v137
    %159 = vmatprep.subr.bf16.mxu0 0
    %160 = vmatpush1.bf16.msra.mxu0 %v138
    %161 = vmatprep.subr.bf16.mxu0 0
    %162 = vmatpush1.bf16.msra.mxu0 %v139
    %163 = vmatprep.subr.bf16.mxu0 0
    %164 = vmatpush1.bf16.msra.mxu0 %v140
    %165 = vmatprep.subr.bf16.mxu0 0
    %166 = vmatpush1.bf16.msra.mxu0 0
    %167 = vmatprep.subr.bf16.mxu0 0
    %168 = vmatpush1.bf16.msra.mxu0 0
    %169 = vmatprep.subr.bf16.mxu0 0
    %170 = vmatpush1.bf16.msra.mxu0 0
    %171 = vmatprep.subr.bf16.mxu0 0
    %172 = vmatpush1.bf16.msra.mxu0 0
    %173 = vmatprep.subr.bf16.mxu0 0
    %174 = vmatpush1.bf16.msra.mxu0 0
    %175 = vmatprep.subr.bf16.mxu0 0
    %176 = vmatpush1.bf16.msra.mxu0 0
    %177 = vmatprep.subr.bf16.mxu0 0
    %178 = vmatpush1.bf16.msra.mxu0 0
    %179 = vmatprep.subr.bf16.mxu0 0
    %180 = vmatpush1.bf16.msra.mxu0 0
    %181 = vmatprep.mubr.bf16.mxu0 0
    %182 = vmatmul.mubr.bf16.gmra.mrb[0].mxu0 %v84
    %v183 = vpop.f32.mrb[0].mxu0
    %v184 = vadd.f32 0.0, %v183
    %v185 = vpop.f32.mrb[0].mxu0
    %v186 = vpop.f32.mrb[0].mxu0
    %v187 = vpop.f32.mrb[0].mxu0
    %188 = vdwg.mxu0
    %v189 = vmul.f32 %v184, %v184
    %v190 = vmul.f32 %v184, %v189
    %v191 = vmul.f32 %v190, 0.044715
    %v192 = vadd.f32 %v184, %v191
    %v193 = vmul.f32 %v192, 0.7978846
    %v194 = vtanh.pop %v193
    %v195 = vadd.f32 %v194, 1.0
    %v196 = vmul.f32 %v195, 0.5
    %v197 = vmul.f32 %v184, %v196
    %v198 = vpack.c.bf16 %v197, %v197
    %v199 = vld [vmem:[#allocation4] sm:$0xf]
    %v200 = vld [vmem:[#allocation4 + $0x4] sm:$0xf]
    %v201 = vld [vmem:[#allocation4 + $0x8] sm:$0xf]
    %v202 = vld [vmem:[#allocation4 + $0xc] sm:$0xf]
    %v203 = vld [vmem:[#allocation4 + $0x10] sm:$0xf]
    %v204 = vld [vmem:[#allocation4 + $0x14] sm:$0xf]
    %v205 = vld [vmem:[#allocation4 + $0x18] sm:$0xf]
    %v206 = vld [vmem:[#allocation4 + $0x1c] sm:$0xf]
    %v207 = vld [vmem:[#allocation4 + $0x20] sm:$0xf]
    %v208 = vld [vmem:[#allocation4 + $0x24] sm:$0xf]
    %v209 = vld [vmem:[#allocation4 + $0x28] sm:$0xf]
    %v210 = vld [vmem:[#allocation4 + $0x2c] sm:$0xf]
    %v211 = vld [vmem:[#allocation4 + $0x30] sm:$0xf]
    %v212 = vld [vmem:[#allocation4 + $0x34] sm:$0xf]
    %v213 = vld [vmem:[#allocation4 + $0x38] sm:$0xf]
    %v214 = vld [vmem:[#allocation4 + $0x3c] sm:$0xf]
    %v215 = vld [vmem:[%s3] sm:$0x1]
    %v217 = vlaneseq
    %v218 = vshrl.u32 %v217, 7
    %v219 = vsub.s32 0, %v218
    %v220 = vrot.slane %v215, %v219
    %v238 = vunpack.c.l.b16 %v199
    %v239 = vunpack.c.l.b16 %v200
    %v240 = vunpack.c.l.b16 %v201
    %v241 = vunpack.c.l.b16 %v202
    %v242 = vunpack.c.l.b16 %v203
    %v243 = vunpack.c.l.b16 %v204
    %v244 = vunpack.c.l.b16 %v205
    %v245 = vunpack.c.l.b16 %v206
    %v246 = vunpack.c.l.b16 %v207
    %v247 = vunpack.c.l.b16 %v208
    %v248 = vunpack.c.l.b16 %v209
    %v249 = vunpack.c.l.b16 %v210
    %v250 = vunpack.c.l.b16 %v211
    %v251 = vunpack.c.l.b16 %v212
    %v252 = vunpack.c.l.b16 %v213
    %v253 = vunpack.c.l.b16 %v214
    %v254 = vpack.c.b16 %v239, %v238
    %v255 = vpack.c.b16 %v241, %v240
    %v256 = vpack.c.b16 %v243, %v242
    %v257 = vpack.c.b16 %v245, %v244
    %v258 = vpack.c.b16 %v247, %v246
    %v259 = vpack.c.b16 %v249, %v248
    %v260 = vpack.c.b16 %v251, %v250
    %v261 = vpack.c.b16 %v253, %v252
    %270 = vmatprep.subr.bf16.mxu0 0
    %271 = vmatpush1.bf16.msra.mxu0 %v254
    %272 = vmatprep.subr.bf16.mxu0 0
    %273 = vmatpush1.bf16.msra.mxu0 %v255
    %274 = vmatprep.subr.bf16.mxu0 0
    %275 = vmatpush1.bf16.msra.mxu0 %v256
    %276 = vmatprep.subr.bf16.mxu0 0
    %277 = vmatpush1.bf16.msra.mxu0 %v257
    %278 = vmatprep.subr.bf16.mxu0 0
    %279 = vmatpush1.bf16.msra.mxu0 %v258
    %280 = vmatprep.subr.bf16.mxu0 0
    %281 = vmatpush1.bf16.msra.mxu0 %v259
    %282 = vmatprep.subr.bf16.mxu0 0
    %283 = vmatpush1.bf16.msra.mxu0 %v260
    %284 = vmatprep.subr.bf16.mxu0 0
    %285 = vmatpush1.bf16.msra.mxu0 %v261
    %286 = vmatprep.subr.bf16.mxu0 0
    %287 = vmatpush1.bf16.msra.mxu0 0
    %288 = vmatprep.subr.bf16.mxu0 0
    %289 = vmatpush1.bf16.msra.mxu0 0
    %290 = vmatprep.subr.bf16.mxu0 0
    %291 = vmatpush1.bf16.msra.mxu0 0
    %292 = vmatprep.subr.bf16.mxu0 0
    %293 = vmatpush1.bf16.msra.mxu0 0
    %294 = vmatprep.subr.bf16.mxu0 0
    %295 = vmatpush1.bf16.msra.mxu0 0
    %296 = vmatprep.subr.bf16.mxu0 0
    %297 = vmatpush1.bf16.msra.mxu0 0
    %298 = vmatprep.subr.bf16.mxu0 0
    %299 = vmatpush1.bf16.msra.mxu0 0
    %300 = vmatprep.subr.bf16.mxu0 0
    %301 = vmatpush1.bf16.msra.mxu0 0
    %302 = vmatprep.mubr.bf16.mxu0 0
    %303 = vmatmul.mubr.bf16.gmra.mrb[0].mxu0 %v198
    %v304 = vpop.f32.mrb[0].mxu0
    %v305 = vadd.f32 %v220, %v304
    %v306 = vpop.f32.mrb[0].mxu0
    %v307 = vpop.f32.mrb[0].mxu0
    %v308 = vpop.f32.mrb[0].mxu0
    %309 = vdwg.mxu0
    %310 = vst [vmem:[%s4] sm:$0xff] %v305
    // Predicated region
    $region26: #{_call_kernel.1} parent=1 // pred_check
      _
    $region27: #{_call_kernel.1} parent=1 // pred_check_branch
      %312 = sbr.rel (0) target = $region29
    $region28: #{_call_kernel.1} parent=1 // pred_region
      _
    $region29: #{_call_kernel.1} parent=1 // pred_fallthru
      _
    // Predicated region
    $region30: #{_call_kernel.1} parent=1 // pred_check
      _
    $region31: #{_call_kernel.1} parent=1 // pred_check_branch
      %314 = sbr.rel (0) target = $region33
    $region32: #{_call_kernel.1} parent=1 // pred_region
      _
    $region33: #{_call_kernel.1} parent=1 // pred_fallthru
      _
    %315 = vsyncpa [#allocation3], 1
    %316 = vsyncpa [#allocation5], 1

</llo_original>
